<compile_context>
chip_gen: v7x
topology: tpu7x:2x2x1
jax: 0.10.0
libtpu: 0.0.40
codegen_flags: <defaults>
</compile_context>

<pallas_src>
import jax
import jax.numpy as jnp
from jax.experimental import pallas as pl
from jax.experimental.pallas import tpu as pltpu

HIDDEN = 512   # fixed hidden width from the module definition
LANE = 128     # TPU lane width
SUBLANE = 8    # f32 sublane count


def _round_up(x, m):
    return ((x + m - 1) // m) * m


def _classifier_kernel(x_ref, w1_ref, b1_ref, w2_ref, b2_ref, o_ref):
    # First linear: [tb, in] @ [in, 512]  (MXU, f32 accumulation)
    h = jnp.dot(x_ref[...], w1_ref[...], preferred_element_type=jnp.float32)
    h = h + b1_ref[...]                      # f32 bias, broadcast over batch tile
    h = h.astype(w2_ref.dtype)               # back to compute dtype for 2nd MXU pass
    # Second linear: [tb, 512] @ [512, nc_pad]  (lane-dense output columns)
    logits = jnp.dot(h, w2_ref[...], preferred_element_type=jnp.float32)
    logits = logits + b2_ref[...]
    # Sigmoid in f32 (EUP exp + VPU recip); lane-dense full-tile store.
    o_ref[...] = jax.nn.sigmoid(logits).astype(o_ref.dtype)


def classifier_forward(x, w1, b1, w2, b2, *, batch_tile=256,
                       compute_dtype=jnp.bfloat16):
    """x: [B, input_size]; w1: [input_size, 512]; b1: [1, 512];
    w2: [512, num_class]; b2: [1, num_class]. Returns [B, num_class] f32."""
    B, in_dim = x.shape
    num_class = w2.shape[1]

    # ---- lane-dense output: zero-pad num_class up to a multiple of 128 ----
    nc_pad = _round_up(num_class, LANE)
    if nc_pad != num_class:
        w2 = jnp.pad(w2, ((0, 0), (0, nc_pad - num_class)))
        b2 = jnp.pad(b2, ((0, 0), (0, nc_pad - num_class)))

    # ---- batch tiling: big sublane-aligned tile, cdiv grid, padded tail ----
    tile = _round_up(min(batch_tile, _round_up(B, SUBLANE)), SUBLANE)
    # Expose >= 2 grid steps when the batch allows it (v7x has 2 TensorCores).
    if pl.cdiv(B, tile) < 2 and B > SUBLANE:
        tile = _round_up(pl.cdiv(B, 2), SUBLANE)
    grid_b = pl.cdiv(B, tile)
    b_pad = grid_b * tile
    if b_pad != B:
        x = jnp.pad(x, ((0, b_pad - B), (0, 0)))

    # ---- dtype boundary: activations + weights in compute_dtype, biases f32 ----
    x_c = x.astype(compute_dtype)
    w1_c = w1.astype(compute_dtype)
    w2_c = w2.astype(compute_dtype)
    b1_f = b1.astype(jnp.float32)
    b2_f = b2.astype(jnp.float32)

    isz = jnp.dtype(compute_dtype).itemsize
    cost = pl.CostEstimate(
        flops=2 * b_pad * (in_dim * HIDDEN + HIDDEN * nc_pad),
        transcendentals=b_pad * nc_pad,
        bytes_accessed=(x_c.size * isz + w1_c.size * isz + w2_c.size * isz
                        + b1_f.size * 4 + b2_f.size * 4 + b_pad * nc_pad * 4),
    )

    out = pl.pallas_call(
        _classifier_kernel,
        out_shape=jax.ShapeDtypeStruct((b_pad, nc_pad), jnp.float32),
        grid_spec=pltpu.PrefetchScalarGridSpec(
            num_scalar_prefetch=0,
            grid=(grid_b,),
            in_specs=[
                pl.BlockSpec((tile, in_dim), lambda i: (i, 0)),      # x tile
                pl.BlockSpec((in_dim, HIDDEN), lambda i: (0, 0)),    # W1 (full)
                pl.BlockSpec((1, HIDDEN), lambda i: (0, 0)),         # b1
                pl.BlockSpec((HIDDEN, nc_pad), lambda i: (0, 0)),    # W2 (padded)
                pl.BlockSpec((1, nc_pad), lambda i: (0, 0)),         # b2 (padded)
            ],
            out_specs=pl.BlockSpec((tile, nc_pad), lambda i: (i, 0)),
        ),
        compiler_params=pltpu.CompilerParams(
            dimension_semantics=("parallel",),
        ),
        cost_estimate=cost,
    )(x_c, w1_c, b1_f, w2_c, b2_f)

    # Strip batch tail + lane padding outside the kernel.
    return out[:B, :num_class]


def init_params(key, input_size, num_class):
    """Mimics PyTorch nn.Linear default init (uniform +-1/sqrt(fan_in)).
    Weights stored as (in_features, out_features) == W.T relative to PyTorch."""
    k1, k2, k3, k4 = jax.random.split(key, 4)
    bound1 = 1.0 / jnp.sqrt(input_size)
    bound2 = 1.0 / jnp.sqrt(HIDDEN)
    w1 = jax.random.uniform(k1, (input_size, HIDDEN), jnp.float32, -bound1, bound1)
    b1 = jax.random.uniform(k2, (1, HIDDEN), jnp.float32, -bound1, bound1)
    w2 = jax.random.uniform(k3, (HIDDEN, num_class), jnp.float32, -bound2, bound2)
    b2 = jax.random.uniform(k4, (1, num_class), jnp.float32, -bound2, bound2)
    return w1, b1, w2, b2


if __name__ == "__main__":
    # Small shapes consistent with the module: input_size=32, num_class=4.
    # Batch chosen so the sublane-aligned 2-step grid path is exercised.
    B, INPUT_SIZE, NUM_CLASS = 64, 32, 4

    key = jax.random.PRNGKey(0)
    kx, kp = jax.random.split(key)
    x = jax.random.normal(kx, (B, INPUT_SIZE), jnp.float32)
    w1, b1, w2, b2 = init_params(kp, INPUT_SIZE, NUM_CLASS)

    # Plain-JAX reference (same math as the PyTorch forward).
    ref = jax.nn.sigmoid((x @ w1 + b1) @ w2 + b2)

    # f32 compute path: tight tolerance check.
    out_f32 = jax.block_until_ready(
        classifier_forward(x, w1, b1, w2, b2, batch_tile=256,
                           compute_dtype=jnp.float32))
    assert out_f32.shape == (B, NUM_CLASS)
    assert jnp.allclose(out_f32, ref, atol=1e-5, rtol=1e-5), "f32 mismatch vs reference"

    # bf16 compute path (recommended perf config on v6e/v7x): loose tolerance.
    out_bf16 = jax.block_until_ready(
        classifier_forward(x, w1, b1, w2, b2, batch_tile=256,
                           compute_dtype=jnp.bfloat16))
    assert out_bf16.shape == (B, NUM_CLASS)
    assert jnp.max(jnp.abs(out_bf16 - ref)) < 2e-2, "bf16 mismatch vs reference"

    print("KERNEL_OK")
</pallas_src>

<mosaic_0001>
module attributes {stable_mosaic.version = 11 : i64} {
  func.func @_classifier_kernel(%arg0: i32, %arg1: memref<32x32xf32, #tpu.memory_space<vmem>>, %arg2: memref<32x512xf32, #tpu.memory_space<vmem>>, %arg3: memref<1x512xf32, #tpu.memory_space<vmem>>, %arg4: memref<512x128xf32, #tpu.memory_space<vmem>>, %arg5: memref<1x128xf32, #tpu.memory_space<vmem>>, %arg6: memref<32x128xf32, #tpu.memory_space<vmem>>) attributes {dimension_semantics = [#tpu.dimension_semantics<parallel>], iteration_bounds = array<i64: 2>, scalar_prefetch = 0 : i64, scratch_operands = 0 : i64, tpu.core_type = #tpu.core_type<tc>, window_params = [{transform_indices = @transform_0, window_bounds = array<i64: 32, 32>}, {pipeline_mode = #tpu.pipeline_mode<synchronous>, transform_indices = @transform_1, window_bounds = array<i64: 32, 512>}, {pipeline_mode = #tpu.pipeline_mode<synchronous>, transform_indices = @transform_2, window_bounds = array<i64: 1, 512>}, {pipeline_mode = #tpu.pipeline_mode<synchronous>, transform_indices = @transform_3, window_bounds = array<i64: 512, 128>}, {pipeline_mode = #tpu.pipeline_mode<synchronous>, transform_indices = @transform_4, window_bounds = array<i64: 1, 128>}, {transform_indices = @transform_5, window_bounds = array<i64: 32, 128>}]} {
    %c0 = arith.constant 0 : index
    %c0_0 = arith.constant 0 : index
    %0 = vector.load %arg1[%c0, %c0_0] : memref<32x32xf32, #tpu.memory_space<vmem>>, vector<32x32xf32>
    %c0_1 = arith.constant 0 : index
    %c0_2 = arith.constant 0 : index
    %1 = vector.load %arg2[%c0_1, %c0_2] : memref<32x512xf32, #tpu.memory_space<vmem>>, vector<32x512xf32>
    %cst = arith.constant dense<0.000000e+00> : vector<32x512xf32>
    %2 = tpu.matmul %0, %1, %cst {dimension_numbers = #tpu.dot_dimension_numbers<[1], [0], [0], [1], [0, 0, 1, 1], [], []>} : vector<32x32xf32>, vector<32x512xf32>, vector<32x512xf32> -> vector<32x512xf32>
    %c0_3 = arith.constant 0 : index
    %c0_4 = arith.constant 0 : index
    %3 = vector.load %arg3[%c0_3, %c0_4] : memref<1x512xf32, #tpu.memory_space<vmem>>, vector<1x512xf32>
    %4 = vector.broadcast %3 : vector<1x512xf32> to vector<32x512xf32>
    %5 = arith.addf %2, %4 : vector<32x512xf32>
    %c0_5 = arith.constant 0 : index
    %c0_6 = arith.constant 0 : index
    %6 = vector.load %arg4[%c0_5, %c0_6] : memref<512x128xf32, #tpu.memory_space<vmem>>, vector<512x128xf32>
    %cst_7 = arith.constant dense<0.000000e+00> : vector<32x128xf32>
    %7 = tpu.matmul %5, %6, %cst_7 {dimension_numbers = #tpu.dot_dimension_numbers<[1], [0], [0], [1], [0, 0, 1, 1], [], []>} : vector<32x512xf32>, vector<512x128xf32>, vector<32x128xf32> -> vector<32x128xf32>
    %c0_8 = arith.constant 0 : index
    %c0_9 = arith.constant 0 : index
    %8 = vector.load %arg5[%c0_8, %c0_9] : memref<1x128xf32, #tpu.memory_space<vmem>>, vector<1x128xf32>
    %9 = vector.broadcast %8 : vector<1x128xf32> to vector<32x128xf32>
    %10 = arith.addf %7, %9 : vector<32x128xf32>
    %11 = arith.negf %10 : vector<32x128xf32>
    %12 = math.exp %11 : vector<32x128xf32>
    %cst_10 = arith.constant 1.000000e+00 : f32
    %13 = vector.broadcast %cst_10 : f32 to vector<32x128xf32>
    %14 = arith.addf %13, %12 : vector<32x128xf32>
    %15 = arith.divf %13, %14 : vector<32x128xf32>
    %c0_11 = arith.constant 0 : index
    %c0_12 = arith.constant 0 : index
    %16 = vector.load %arg6[%c0_11, %c0_12] : memref<32x128xf32, #tpu.memory_space<vmem>>, vector<32x128xf32>
    tpu.vector_store %arg6[%c0_11, %c0_12], %15 {strides = array<i32>} : memref<32x128xf32, #tpu.memory_space<vmem>>, vector<32x128xf32>,
    return
  }
  func.func @transform_0(%arg0: i32) -> (i32, i32) {
    %c0_i32 = arith.constant 0 : i32
    %c0_i32_0 = arith.constant 0 : i32
    return %arg0, %c0_i32 : i32, i32
  }
  func.func @transform_1(%arg0: i32) -> (i32, i32) {
    %c0_i32 = arith.constant 0 : i32
    %c0_i32_0 = arith.constant 0 : i32
    %c0_i32_1 = arith.constant 0 : i32
    return %c0_i32, %c0_i32_0 : i32, i32
  }
  func.func @transform_2(%arg0: i32) -> (i32, i32) {
    %c0_i32 = arith.constant 0 : i32
    %c0_i32_0 = arith.constant 0 : i32
    %c0_i32_1 = arith.constant 0 : i32
    return %c0_i32, %c0_i32_0 : i32, i32
  }
  func.func @transform_3(%arg0: i32) -> (i32, i32) {
    %c0_i32 = arith.constant 0 : i32
    %c0_i32_0 = arith.constant 0 : i32
    %c0_i32_1 = arith.constant 0 : i32
    return %c0_i32, %c0_i32_0 : i32, i32
  }
  func.func @transform_4(%arg0: i32) -> (i32, i32) {
    %c0_i32 = arith.constant 0 : i32
    %c0_i32_0 = arith.constant 0 : i32
    %c0_i32_1 = arith.constant 0 : i32
    return %c0_i32, %c0_i32_0 : i32, i32
  }
  func.func @transform_5(%arg0: i32) -> (i32, i32) {
    %c0_i32 = arith.constant 0 : i32
    %c0_i32_0 = arith.constant 0 : i32
    return %arg0, %c0_i32 : i32, i32
  }
}

</mosaic_0001>

<llo_original>
// kernel: tpu_custom_call.1
$region0: #{tpu_custom_call.1}
  #allocation0 [shape = 'u32[]', space=smem, size = 0x4, offset = 0x4, fixed_abs, tag = 'smem constant byte address 0x4 - core index']
  #allocation1 [shape = 'u32[144,128]{1,0:T(1,128)}', space=vmem, size = 0x12000, scoped, tag = 'internal scratch']
  %s0 = inlined_call_operand.vmem [shape: f32[64,32], index: 0, kind: input, shape index: {}]
  %s1 = inlined_call_operand.hbm [shape: f32[32,512], index: 1, kind: input, shape index: {}]
  %s2 = inlined_call_operand.vmem [shape: f32[1,512], index: 2, kind: input, shape index: {}]
  %s3 = inlined_call_operand.hbm [shape: f32[512,128], index: 3, kind: input, shape index: {}]
  %s4 = inlined_call_operand.vmem [shape: f32[1,128], index: 4, kind: input, shape index: {}]
  %s5 = inlined_call_operand.hbm [shape: f32[64,128], index: 5, kind: output, shape index: {}]
  %s6 = sld [smem:[#allocation0]]
  $region61: #{tpu_custom_call.1} parent=0
    _
  %s8 = ssub.s32 1, %s6
  %s9 = scalar_select 0, %s8, %s6
  $region1: #{tpu_custom_call.1} parent=0
    #allocation2 [shape = 'u8[65536]{0}', space=vmem, size = 0x10000, scoped, tag = 'input window, operand 1, single buffered']
    #allocation3 [shape = 's32[2]{0}', space=sflag, size = 0x8, scoped, tag = 'scoped memory for tpu_custom_call.1']
    #allocation4 [shape = 's32[2]{0}', space=sflag, size = 0x8, scoped, tag = 'scoped memory for tpu_custom_call.1']
    #allocation5 [shape = 'u8[262144]{0}', space=vmem, size = 0x40000, scoped, tag = 'input window, operand 3, single buffered']
    #allocation6 [shape = 's32[1]{0}', space=sflag, size = 0x4, scoped, tag = 'scoped memory for tpu_custom_call.1']
    #allocation7 [shape = 'u8[32768]{0}', space=vmem, size = 0x8000, scoped, tag = 'output window, operand 0']
    %10 = vsyncpa [#allocation3], 0
    %11 = vsyncpa [#allocation6], 0
    %12 = vsyncpa [#allocation4], 0
    %s13 = scalar_lea.sflag [#allocation4], 1
    %14 = vsyncpa %s13, 0
    loop: start=0, step=1, limit=4
    $region2: #{tpu_custom_call.1} parent=1 // loop_pre_header
      _
    $region3: #{tpu_custom_call.1} parent=1 // loop_header
      %s16 = sphi 0, %s20
      %p17 = scmp.ge.s32.totalorder %s16, 4
      %s26 = sphi 0, %s28
      %s29 = sphi 0, %s26
      %s30 = sphi 0, %s29
      %s46 = sphi 0, %s30
      %s50 = sphi 0, %s50
      %s52 = sphi 0, %s50
      %s53 = sphi 0, %s52
      %s67 = sphi 0, %s53
      %s71 = sphi 0, %s71
      %s73 = sphi 0, %s71
      %s74 = sphi 0, %s73
      %s88 = sphi 0, %s74
      %s92 = sphi 0, %s92
      %s94 = sphi 0, %s92
      %s95 = sphi 0, %s94
      %s109 = sphi 0, %s95
      %s113 = sphi 0, %s113
      %s115 = sphi 0, %s113
      %s116 = sphi 0, %s115
      %s130 = sphi 0, %s116
      %s136 = sphi 0, %s138
      %s139 = sphi 0, %s136
      %s140 = sphi 0, %s139
      %s156 = sphi 0, %s140
    $region4: #{tpu_custom_call.1} parent=1 // loop_header_branch
      %19 = sbr.rel (%p17) target = $region8
    $region5: #{tpu_custom_call.1} parent=1 // loop_body
      %s21 = ssub.s32 %s16, 1
      %s22 = ssub.s32 %s16, 2
      %s23 = sadd.s32 %s16, 1
      %s24 = ssub.s32 %s16, %s23
      %p25 = scmp.eq.s32.totalorder %s24, 0
      %s27 = sadd.s32 %s26, 1
      %s28 = scalar_select %p25, %s26, %s27
      %p31 = pneg %p25
      %p32 = scmp.eq.s32.totalorder %s16, 1
      %p33 = por %p31, %p32
      %p34 = scmp.ne.s32.totalorder %s26, %s29
      %p35 = scmp.eq.s32.totalorder %s16, 0
      %p36 = por %p34, %p35
      %p37 = scmp.ne.s32.totalorder %s26, %s29
      %p38 = scmp.eq.s32.totalorder %s21, 1
      %p39 = por %p37, %p38
      %p40 = scmp.ne.s32.totalorder %s29, %s30
      %p41 = scmp.eq.s32.totalorder %s21, 0
      %p42 = por %p40, %p41
      %p43 = scmp.ne.s32.totalorder %s29, %s30
      %p44 = scmp.eq.s32.totalorder %s22, 1
      %p45 = por %p43, %p44
      %p47 = scmp.ne.s32.totalorder %s30, %s46
      %p48 = scmp.eq.s32.totalorder %s22, 0
      %p49 = por %p47, %p48
      %s51 = sadd.s32 %s50, 1
      %p54 = scmp.eq.s32.totalorder %s16, 1
      %p55 = scmp.ne.s32.totalorder %s50, %s52
      %p56 = scmp.eq.s32.totalorder %s16, 0
      %p57 = por %p55, %p56
      %p58 = scmp.ne.s32.totalorder %s50, %s52
      %p59 = scmp.eq.s32.totalorder %s21, 1
      %p60 = por %p58, %p59
      %p61 = scmp.ne.s32.totalorder %s52, %s53
      %p62 = scmp.eq.s32.totalorder %s21, 0
      %p63 = por %p61, %p62
      %p64 = scmp.ne.s32.totalorder %s52, %s53
      %p65 = scmp.eq.s32.totalorder %s22, 1
      %p66 = por %p64, %p65
      %p68 = scmp.ne.s32.totalorder %s53, %s67
      %p69 = scmp.eq.s32.totalorder %s22, 0
      %p70 = por %p68, %p69
      %s72 = sadd.s32 %s71, 1
      %p75 = scmp.eq.s32.totalorder %s16, 1
      %p76 = scmp.ne.s32.totalorder %s71, %s73
      %p77 = scmp.eq.s32.totalorder %s16, 0
      %p78 = por %p76, %p77
      %p79 = scmp.ne.s32.totalorder %s71, %s73
      %p80 = scmp.eq.s32.totalorder %s21, 1
      %p81 = por %p79, %p80
      %p82 = scmp.ne.s32.totalorder %s73, %s74
      %p83 = scmp.eq.s32.totalorder %s21, 0
      %p84 = por %p82, %p83
      %p85 = scmp.ne.s32.totalorder %s73, %s74
      %p86 = scmp.eq.s32.totalorder %s22, 1
      %p87 = por %p85, %p86
      %p89 = scmp.ne.s32.totalorder %s74, %s88
      %p90 = scmp.eq.s32.totalorder %s22, 0
      %p91 = por %p89, %p90
      %s93 = sadd.s32 %s92, 1
      %p96 = scmp.eq.s32.totalorder %s16, 1
      %p97 = scmp.ne.s32.totalorder %s92, %s94
      %p98 = scmp.eq.s32.totalorder %s16, 0
      %p99 = por %p97, %p98
      %p100 = scmp.ne.s32.totalorder %s92, %s94
      %p101 = scmp.eq.s32.totalorder %s21, 1
      %p102 = por %p100, %p101
      %p103 = scmp.ne.s32.totalorder %s94, %s95
      %p104 = scmp.eq.s32.totalorder %s21, 0
      %p105 = por %p103, %p104
      %p106 = scmp.ne.s32.totalorder %s94, %s95
      %p107 = scmp.eq.s32.totalorder %s22, 1
      %p108 = por %p106, %p107
      %p110 = scmp.ne.s32.totalorder %s95, %s109
      %p111 = scmp.eq.s32.totalorder %s22, 0
      %p112 = por %p110, %p111
      %s114 = sadd.s32 %s113, 1
      %p117 = scmp.eq.s32.totalorder %s16, 1
      %p118 = scmp.ne.s32.totalorder %s113, %s115
      %p119 = scmp.eq.s32.totalorder %s16, 0
      %p120 = por %p118, %p119
      %p121 = scmp.ne.s32.totalorder %s113, %s115
      %p122 = scmp.eq.s32.totalorder %s21, 1
      %p123 = por %p121, %p122
      %p124 = scmp.ne.s32.totalorder %s115, %s116
      %p125 = scmp.eq.s32.totalorder %s21, 0
      %p126 = por %p124, %p125
      %p127 = scmp.ne.s32.totalorder %s115, %s116
      %p128 = scmp.eq.s32.totalorder %s22, 1
      %p129 = por %p127, %p128
      %p131 = scmp.ne.s32.totalorder %s116, %s130
      %p132 = scmp.eq.s32.totalorder %s22, 0
      %p133 = por %p131, %p132
      %s134 = ssub.s32 %s16, %s23
      %p135 = scmp.eq.s32.totalorder %s134, 0
      %s137 = sadd.s32 %s136, 1
      %s138 = scalar_select %p135, %s136, %s137
      %p141 = pneg %p135
      %p142 = scmp.eq.s32.totalorder %s16, 1
      %p143 = por %p141, %p142
      %p144 = scmp.ne.s32.totalorder %s136, %s139
      %p145 = scmp.eq.s32.totalorder %s16, 0
      %p146 = por %p144, %p145
      %p147 = scmp.ne.s32.totalorder %s136, %s139
      %p148 = scmp.eq.s32.totalorder %s21, 1
      %p149 = por %p147, %p148
      %p150 = scmp.ne.s32.totalorder %s139, %s140
      %p151 = scmp.eq.s32.totalorder %s21, 0
      %p152 = por %p150, %p151
      %p153 = scmp.ne.s32.totalorder %s139, %s140
      %p154 = scmp.eq.s32.totalorder %s22, 1
      %p155 = por %p153, %p154
      %p157 = scmp.ne.s32.totalorder %s140, %s156
      %p158 = scmp.eq.s32.totalorder %s22, 0
      %p159 = por %p157, %p158
      %p160 = scmp.le.s32.totalorder 1, %s16
      %p161 = scmp.lt.s32.totalorder %s16, 3
      %p162 = pnand %p160, %p161
      %p163 = pneg %p162
      // Predicated region
      $region9: #{tpu_custom_call.1} parent=5 // pred_check
        _
      $region10: #{tpu_custom_call.1} parent=5 // pred_check_branch
        %165 = sbr.rel (%p162) target = $region12
      $region11: #{tpu_custom_call.1} parent=5 // pred_region
        %s166 = ssub.s32 %s16, 1
        // Predicated region
        $region13: #{tpu_custom_call.1} parent=11 // pred_check
          %p167 = pneg %p63
        $region14: #{tpu_custom_call.1} parent=11 // pred_check_branch
          %169 = sbr.rel (%p167) target = $region16
        $region15: #{tpu_custom_call.1} parent=11 // pred_region
          %s171 = ssub.s32 2048, 2048
          %172 = vsyncadd [#allocation3], %s171
          %s173 = sshll.u32 [#allocation2], 4
          %s174 = int_to_ptr.vmem [resolvable:$true] %s173
          %179 = dma.hbm_to_vmem [thread:$0]  %s1, 2048, %s174, [#allocation3], 512, 512, 32
        $region16: #{tpu_custom_call.1} parent=11 // pred_fallthru
          _
        // Predicated region
        $region17: #{tpu_custom_call.1} parent=11 // pred_check
          %p180 = pneg %p84
        $region18: #{tpu_custom_call.1} parent=11 // pred_check_branch
          %182 = sbr.rel (%p180) target = $region20
        $region19: #{tpu_custom_call.1} parent=11 // pred_region
          _
        $region20: #{tpu_custom_call.1} parent=11 // pred_fallthru
          _
        // Predicated region
        $region21: #{tpu_custom_call.1} parent=11 // pred_check
          %p183 = pneg %p105
        $region22: #{tpu_custom_call.1} parent=11 // pred_check_branch
          %185 = sbr.rel (%p183) target = $region24
        $region23: #{tpu_custom_call.1} parent=11 // pred_region
          %s187 = ssub.s32 8192, 8192
          %188 = vsyncadd [#allocation6], %s187
          %s189 = sshll.u32 [#allocation5], 4
          %s190 = int_to_ptr.vmem [resolvable:$true] %s189
          %195 = dma.hbm_to_vmem [thread:$0]  %s3, 8192, %s190, [#allocation6], 128, 128, 8
        $region24: #{tpu_custom_call.1} parent=11 // pred_fallthru
          _
        // Predicated region
        $region25: #{tpu_custom_call.1} parent=11 // pred_check
          %p196 = pneg %p126
        $region26: #{tpu_custom_call.1} parent=11 // pred_check_branch
          %198 = sbr.rel (%p196) target = $region28
        $region27: #{tpu_custom_call.1} parent=11 // pred_region
          _
        $region28: #{tpu_custom_call.1} parent=11 // pred_fallthru
          _
      $region12: #{tpu_custom_call.1} parent=5 // pred_fallthru
        _
      %p199 = scmp.lt.s32.totalorder %s16, 2
      // Predicated region
      $region29: #{tpu_custom_call.1} parent=5 // pred_check
        %p200 = pneg %p199
      $region30: #{tpu_custom_call.1} parent=5 // pred_check_branch
        %202 = sbr.rel (%p200) target = $region32
      $region31: #{tpu_custom_call.1} parent=5 // pred_region
        // Predicated region
        $region33: #{tpu_custom_call.1} parent=31 // pred_check
          %p203 = pneg %p36
        $region34: #{tpu_custom_call.1} parent=31 // pred_check_branch
          %205 = sbr.rel (%p203) target = $region36
        $region35: #{tpu_custom_call.1} parent=31 // pred_region
          %s206 = smul.u32 4, %s16
          %p207 = scmp.lt.s32.totalorder %s206, 7
          %s208 = scalar_select %p207, %s206, 7
          %s209 = smul.addr %s208, 8
          %s210 = scalar_lea.vmem %s0, %s209
          %s211 = smul.u32 4, %s16
        $region36: #{tpu_custom_call.1} parent=31 // pred_fallthru
          _
      $region32: #{tpu_custom_call.1} parent=5 // pred_fallthru
        _
      %p212 = scmp.le.s32.totalorder 1, %s16
      %p213 = scmp.lt.s32.totalorder %s16, 3
      %p214 = pnand %p212, %p213
      %p215 = pneg %p214
      // Predicated region
      $region37: #{tpu_custom_call.1} parent=5 // pred_check
        _
      $region38: #{tpu_custom_call.1} parent=5 // pred_check_branch
        %217 = sbr.rel (%p214) target = $region40
      $region39: #{tpu_custom_call.1} parent=5 // pred_region
        %s218 = ssub.s32 %s16, 1
        // Predicated region
        $region41: #{tpu_custom_call.1} parent=39 // pred_check
          %p219 = pneg %p63
        $region42: #{tpu_custom_call.1} parent=39 // pred_check_branch
          %221 = sbr.rel (%p219) target = $region44
        $region43: #{tpu_custom_call.1} parent=39 // pred_region
          %222 = dma.done [#allocation3], 2048
        $region44: #{tpu_custom_call.1} parent=39 // pred_fallthru
          _
        // Predicated region
        $region45: #{tpu_custom_call.1} parent=39 // pred_check
          %p223 = pneg %p105
        $region46: #{tpu_custom_call.1} parent=39 // pred_check_branch
          %225 = sbr.rel (%p223) target = $region48
        $region47: #{tpu_custom_call.1} parent=39 // pred_region
          %226 = dma.done [#allocation6], 8192
        $region48: #{tpu_custom_call.1} parent=39 // pred_fallthru
          _
        %s227 = smul.u32 4, %s21
        %p228 = scmp.lt.s32.totalorder %s227, 7
        %s229 = scalar_select %p228, %s227, 7
        %s230 = smul.addr %s229, 8
        %s231 = scalar_lea.vmem %s0, %s230
        %p232 = pneg %p42
        %p233 = pneg %p39
        %p234 = pneg %p63
        %p235 = pneg %p60
        %p236 = pneg %p84
        %p237 = pneg %p81
        %p238 = pneg %p105
        %p239 = pneg %p102
        %p240 = pneg %p126
        %p241 = pneg %p123
        %p242 = pneg %p152
        %p243 = pneg %p149
        %s244 = sand.u32 %s139, 1
        %s245 = scalar_lea.sflag [#allocation4], %s244
        %s246 = sand.u32 %s139, 1
        %s247 = smul.addr %s246, 32
        %s248 = scalar_lea.vmem [#allocation7], %s247
        %s249 = smul.u32 4, %s21
        %p250 = scmp.lt.s32.totalorder %s249, 7
        %s251 = scalar_select %p250, %s249, 7
        %s252 = smul.addr %s251, 8
        %s253 = scalar_lea.vmem %s0, %s252
        %s254 = smul.u32 4, %s21
        %s255 = smul.u32 4, %s21
        %v256 = vld [vmem:[%s253] sm:$0xff]
        %v257 = vld [vmem:[%s253 + $0x8] sm:$0xff]
        %v258 = vld [vmem:[%s253 + $0x10] sm:$0xff]
        %v259 = vld [vmem:[%s253 + $0x18] sm:$0xff]
        %v260 = vld [vmem:[#allocation2] sm:$0xff]
        %v261 = vld [vmem:[#allocation2 + $0x8] sm:$0xff]
        %v262 = vld [vmem:[#allocation2 + $0x10] sm:$0xff]
        %v263 = vld [vmem:[#allocation2 + $0x18] sm:$0xff]
        %v264 = vld [vmem:[#allocation2 + $0x20] sm:$0xff]
        %v265 = vld [vmem:[#allocation2 + $0x28] sm:$0xff]
        %v266 = vld [vmem:[#allocation2 + $0x30] sm:$0xff]
        %v267 = vld [vmem:[#allocation2 + $0x38] sm:$0xff]
        %v268 = vld [vmem:[#allocation2 + $0x40] sm:$0xff]
        %v269 = vld [vmem:[#allocation2 + $0x48] sm:$0xff]
        %v270 = vld [vmem:[#allocation2 + $0x50] sm:$0xff]
        %v271 = vld [vmem:[#allocation2 + $0x58] sm:$0xff]
        %v272 = vld [vmem:[#allocation2 + $0x60] sm:$0xff]
        %v273 = vld [vmem:[#allocation2 + $0x68] sm:$0xff]
        %v274 = vld [vmem:[#allocation2 + $0x70] sm:$0xff]
        %v275 = vld [vmem:[#allocation2 + $0x78] sm:$0xff]
        %v276 = vld [vmem:[%s2] sm:$0xf]
        %v278 = vlaneseq
        %v279 = vshrl.u32 %v278, 7
        %v280 = vsub.s32 0, %v279
        %v281 = vrot.slane %v276, %v280
        %v282 = vlaneseq
        %v283 = vshrl.u32 %v282, 7
        %v284 = vsub.s32 1, %v283
        %v285 = vrot.slane %v276, %v284
        %v286 = vlaneseq
        %v287 = vshrl.u32 %v286, 7
        %v288 = vsub.s32 2, %v287
        %v289 = vrot.slane %v276, %v288
        %v290 = vlaneseq
        %v291 = vshrl.u32 %v290, 7
        %v292 = vsub.s32 3, %v291
        %v293 = vrot.slane %v276, %v292
        %vm298 = vcmask 261120
        %v300 = vsel %vm298, %v256, 0
        %v303 = vsel %vm298, %v257, 0
        %v306 = vsel %vm298, %v258, 0
        %v309 = vsel %vm298, %v259, 0
        %311 = vmatprep.subr.mxu0 %v261
        %312 = vmatpush1.msra.mxu0 %v260
        %313 = vmatprep.subr.mxu0 %v265
        %314 = vmatpush1.msra.mxu0 %v264
        %315 = vmatprep.subr.mxu0 %v269
        %316 = vmatpush1.msra.mxu0 %v268
        %317 = vmatprep.subr.mxu0 %v273
        %318 = vmatpush1.msra.mxu0 %v272
        %319 = vmatprep.subr.mxu0 0.0
        %320 = vmatpush1.msra.mxu0 0.0
        %321 = vmatprep.subr.mxu0 0.0
        %322 = vmatpush1.msra.mxu0 0.0
        %323 = vmatprep.subr.mxu0 0.0
        %324 = vmatpush1.msra.mxu0 0.0
        %325 = vmatprep.subr.mxu0 0.0
        %326 = vmatpush1.msra.mxu0 0.0
        %327 = vmatprep.subr.mxu0 0.0
        %328 = vmatpush1.msra.mxu0 0.0
        %329 = vmatprep.subr.mxu0 0.0
        %330 = vmatpush1.msra.mxu0 0.0
        %331 = vmatprep.subr.mxu0 0.0
        %332 = vmatpush1.msra.mxu0 0.0
        %333 = vmatprep.subr.mxu0 0.0
        %334 = vmatpush1.msra.mxu0 0.0
        %335 = vmatprep.subr.mxu0 0.0
        %336 = vmatpush1.msra.mxu0 0.0
        %337 = vmatprep.subr.mxu0 0.0
        %338 = vmatpush1.msra.mxu0 0.0
        %339 = vmatprep.subr.mxu0 0.0
        %340 = vmatpush1.msra.mxu0 0.0
        %341 = vmatprep.subr.mxu0 0.0
        %342 = vmatpush1.msra.mxu0 0.0
        %343 = vmatprep.subr.mxu0 0.0
        %344 = vmatpush1.msra.mxu0 0.0
        %345 = vmatprep.subr.mxu0 0.0
        %346 = vmatpush1.msra.mxu0 0.0
        %347 = vmatprep.subr.mxu0 0.0
        %348 = vmatpush1.msra.mxu0 0.0
        %349 = vmatprep.subr.mxu0 0.0
        %350 = vmatpush1.msra.mxu0 0.0
        %351 = vmatprep.subr.mxu0 0.0
        %352 = vmatpush1.msra.mxu0 0.0
        %353 = vmatprep.subr.mxu0 0.0
        %354 = vmatpush1.msra.mxu0 0.0
        %355 = vmatprep.subr.mxu0 0.0
        %356 = vmatpush1.msra.mxu0 0.0
        %357 = vmatprep.subr.mxu0 0.0
        %358 = vmatpush1.msra.mxu0 0.0
        %359 = vmatprep.subr.mxu0 0.0
        %360 = vmatpush1.msra.mxu0 0.0
        %361 = vmatprep.subr.mxu0 0.0
        %362 = vmatpush1.msra.mxu0 0.0
        %363 = vmatprep.subr.mxu0 0.0
        %364 = vmatpush1.msra.mxu0 0.0
        %365 = vmatprep.subr.mxu0 0.0
        %366 = vmatpush1.msra.mxu0 0.0
        %367 = vmatprep.subr.mxu0 0.0
        %368 = vmatpush1.msra.mxu0 0.0
        %369 = vmatprep.subr.mxu0 0.0
        %370 = vmatpush1.msra.mxu0 0.0
        %371 = vmatprep.subr.mxu0 0.0
        %372 = vmatpush1.msra.mxu0 0.0
        %373 = vmatprep.subr.mxu0 0.0
        %374 = vmatpush1.msra.mxu0 0.0
        %375 = vmatprep.mubr.f32.mxu0 0.0
        %376 = vmatmul.mubr.f32.gmra.mrb[0].mxu0 %v300
        %v377 = vpop.f32.mrb[0].mxu0
        %v378 = vadd.f32 %v281, %v377
        %v379 = vpop.f32.mrb[0].mxu0
        %v380 = vadd.f32 %v285, %v379
        %381 = vmatprep.mubr.f32.mxu0 0.0
        %382 = vmatmul.mubr.f32.gmra.mrb[0].mxu0 %v303
        %v383 = vpop.f32.mrb[0].mxu0
        %v384 = vadd.f32 %v281, %v383
        %v385 = vpop.f32.mrb[0].mxu0
        %v386 = vadd.f32 %v285, %v385
        %387 = vmatprep.mubr.f32.mxu0 0.0
        %388 = vmatmul.mubr.f32.gmra.mrb[0].mxu0 %v306
        %v389 = vpop.f32.mrb[0].mxu0
        %v390 = vadd.f32 %v281, %v389
        %v391 = vpop.f32.mrb[0].mxu0
        %v392 = vadd.f32 %v285, %v391
        %393 = vmatprep.mubr.f32.mxu0 0.0
        %394 = vmatmul.mubr.f32.gmra.mrb[0].mxu0 %v309
        %v395 = vpop.f32.mrb[0].mxu0
        %v396 = vadd.f32 %v281, %v395
        %v397 = vpop.f32.mrb[0].mxu0
        %v398 = vadd.f32 %v285, %v397
        %399 = vdwg.mxu0
        %400 = vmatprep.subr.mxu0 %v263
        %401 = vmatpush1.msra.mxu0 %v262
        %402 = vmatprep.subr.mxu0 %v267
        %403 = vmatpush1.msra.mxu0 %v266
        %404 = vmatprep.subr.mxu0 %v271
        %405 = vmatpush1.msra.mxu0 %v270
        %406 = vmatprep.subr.mxu0 %v275
        %407 = vmatpush1.msra.mxu0 %v274
        %408 = vmatprep.subr.mxu0 0.0
        %409 = vmatpush1.msra.mxu0 0.0
        %410 = vmatprep.subr.mxu0 0.0
        %411 = vmatpush1.msra.mxu0 0.0
        %412 = vmatprep.subr.mxu0 0.0
        %413 = vmatpush1.msra.mxu0 0.0
        %414 = vmatprep.subr.mxu0 0.0
        %415 = vmatpush1.msra.mxu0 0.0
        %416 = vmatprep.subr.mxu0 0.0
        %417 = vmatpush1.msra.mxu0 0.0
        %418 = vmatprep.subr.mxu0 0.0
        %419 = vmatpush1.msra.mxu0 0.0
        %420 = vmatprep.subr.mxu0 0.0
        %421 = vmatpush1.msra.mxu0 0.0
        %422 = vmatprep.subr.mxu0 0.0
        %423 = vmatpush1.msra.mxu0 0.0
        %424 = vmatprep.subr.mxu0 0.0
        %425 = vmatpush1.msra.mxu0 0.0
        %426 = vmatprep.subr.mxu0 0.0
        %427 = vmatpush1.msra.mxu0 0.0
        %428 = vmatprep.subr.mxu0 0.0
        %429 = vmatpush1.msra.mxu0 0.0
        %430 = vmatprep.subr.mxu0 0.0
        %431 = vmatpush1.msra.mxu0 0.0
        %432 = vmatprep.subr.mxu0 0.0
        %433 = vmatpush1.msra.mxu0 0.0
        %434 = vmatprep.subr.mxu0 0.0
        %435 = vmatpush1.msra.mxu0 0.0
        %436 = vmatprep.subr.mxu0 0.0
        %437 = vmatpush1.msra.mxu0 0.0
        %438 = vmatprep.subr.mxu0 0.0
        %439 = vmatpush1.msra.mxu0 0.0
        %440 = vmatprep.subr.mxu0 0.0
        %441 = vmatpush1.msra.mxu0 0.0
        %442 = vmatprep.subr.mxu0 0.0
        %443 = vmatpush1.msra.mxu0 0.0
        %444 = vmatprep.subr.mxu0 0.0
        %445 = vmatpush1.msra.mxu0 0.0
        %446 = vmatprep.subr.mxu0 0.0
        %447 = vmatpush1.msra.mxu0 0.0
        %448 = vmatprep.subr.mxu0 0.0
        %449 = vmatpush1.msra.mxu0 0.0
        %450 = vmatprep.subr.mxu0 0.0
        %451 = vmatpush1.msra.mxu0 0.0
        %452 = vmatprep.subr.mxu0 0.0
        %453 = vmatpush1.msra.mxu0 0.0
        %454 = vmatprep.subr.mxu0 0.0
        %455 = vmatpush1.msra.mxu0 0.0
        %456 = vmatprep.subr.mxu0 0.0
        %457 = vmatpush1.msra.mxu0 0.0
        %458 = vmatprep.subr.mxu0 0.0
        %459 = vmatpush1.msra.mxu0 0.0
        %460 = vmatprep.subr.mxu0 0.0
        %461 = vmatpush1.msra.mxu0 0.0
        %462 = vmatprep.subr.mxu0 0.0
        %463 = vmatpush1.msra.mxu0 0.0
        %464 = vmatprep.mubr.f32.mxu0 0.0
        %465 = vmatmul.mubr.f32.gmra.mrb[0].mxu0 %v300
        %v466 = vpop.f32.mrb[0].mxu0
        %v467 = vadd.f32 %v289, %v466
        %v468 = vpop.f32.mrb[0].mxu0
        %v469 = vadd.f32 %v293, %v468
        %470 = vmatprep.mubr.f32.mxu0 0.0
        %471 = vmatmul.mubr.f32.gmra.mrb[0].mxu0 %v303
        %v472 = vpop.f32.mrb[0].mxu0
        %v473 = vadd.f32 %v289, %v472
        %v474 = vpop.f32.mrb[0].mxu0
        %v475 = vadd.f32 %v293, %v474
        %476 = vmatprep.mubr.f32.mxu0 0.0
        %477 = vmatmul.mubr.f32.gmra.mrb[0].mxu0 %v306
        %v478 = vpop.f32.mrb[0].mxu0
        %v479 = vadd.f32 %v289, %v478
        %v480 = vpop.f32.mrb[0].mxu0
        %v481 = vadd.f32 %v293, %v480
        %482 = vmatprep.mubr.f32.mxu0 0.0
        %483 = vmatmul.mubr.f32.gmra.mrb[0].mxu0 %v309
        %v484 = vpop.f32.mrb[0].mxu0
        %v485 = vadd.f32 %v289, %v484
        %v486 = vpop.f32.mrb[0].mxu0
        %v487 = vadd.f32 %v293, %v486
        %488 = vdwg.mxu0
        %v489 = vld [vmem:[#allocation5] sm:$0xff]
        %v490 = vld [vmem:[#allocation5 + $0x8] sm:$0xff]
        %v491 = vld [vmem:[#allocation5 + $0x10] sm:$0xff]
        %v492 = vld [vmem:[#allocation5 + $0x18] sm:$0xff]
        %v493 = vld [vmem:[#allocation5 + $0x20] sm:$0xff]
        %v494 = vld [vmem:[#allocation5 + $0x28] sm:$0xff]
        %v495 = vld [vmem:[#allocation5 + $0x30] sm:$0xff]
        %v496 = vld [vmem:[#allocation5 + $0x38] sm:$0xff]
        %v497 = vld [vmem:[#allocation5 + $0x40] sm:$0xff]
        %v498 = vld [vmem:[#allocation5 + $0x48] sm:$0xff]
        %v499 = vld [vmem:[#allocation5 + $0x50] sm:$0xff]
        %v500 = vld [vmem:[#allocation5 + $0x58] sm:$0xff]
        %v501 = vld [vmem:[#allocation5 + $0x60] sm:$0xff]
        %v502 = vld [vmem:[#allocation5 + $0x68] sm:$0xff]
        %v503 = vld [vmem:[#allocation5 + $0x70] sm:$0xff]
        %v504 = vld [vmem:[#allocation5 + $0x78] sm:$0xff]
        %v505 = vld [vmem:[#allocation5 + $0x80] sm:$0xff]
        %v506 = vld [vmem:[#allocation5 + $0x88] sm:$0xff]
        %v507 = vld [vmem:[#allocation5 + $0x90] sm:$0xff]
        %v508 = vld [vmem:[#allocation5 + $0x98] sm:$0xff]
        %v509 = vld [vmem:[#allocation5 + $0xa0] sm:$0xff]
        %v510 = vld [vmem:[#allocation5 + $0xa8] sm:$0xff]
        %v511 = vld [vmem:[#allocation5 + $0xb0] sm:$0xff]
        %v512 = vld [vmem:[#allocation5 + $0xb8] sm:$0xff]
        %v513 = vld [vmem:[#allocation5 + $0xc0] sm:$0xff]
        %v514 = vld [vmem:[#allocation5 + $0xc8] sm:$0xff]
        %v515 = vld [vmem:[#allocation5 + $0xd0] sm:$0xff]
        %v516 = vld [vmem:[#allocation5 + $0xd8] sm:$0xff]
        %v517 = vld [vmem:[#allocation5 + $0xe0] sm:$0xff]
        %v518 = vld [vmem:[#allocation5 + $0xe8] sm:$0xff]
        %v519 = vld [vmem:[#allocation5 + $0xf0] sm:$0xff]
        %v520 = vld [vmem:[#allocation5 + $0xf8] sm:$0xff]
        %v521 = vld [vmem:[#allocation5 + $0x100] sm:$0xff]
        %v522 = vld [vmem:[#allocation5 + $0x108] sm:$0xff]
        %v523 = vld [vmem:[#allocation5 + $0x110] sm:$0xff]
        %v524 = vld [vmem:[#allocation5 + $0x118] sm:$0xff]
        %v525 = vld [vmem:[#allocation5 + $0x120] sm:$0xff]
        %v526 = vld [vmem:[#allocation5 + $0x128] sm:$0xff]
        %v527 = vld [vmem:[#allocation5 + $0x130] sm:$0xff]
        %v528 = vld [vmem:[#allocation5 + $0x138] sm:$0xff]
        %v529 = vld [vmem:[#allocation5 + $0x140] sm:$0xff]
        %v530 = vld [vmem:[#allocation5 + $0x148] sm:$0xff]
        %v531 = vld [vmem:[#allocation5 + $0x150] sm:$0xff]
        %v532 = vld [vmem:[#allocation5 + $0x158] sm:$0xff]
        %v533 = vld [vmem:[#allocation5 + $0x160] sm:$0xff]
        %v534 = vld [vmem:[#allocation5 + $0x168] sm:$0xff]
        %v535 = vld [vmem:[#allocation5 + $0x170] sm:$0xff]
        %v536 = vld [vmem:[#allocation5 + $0x178] sm:$0xff]
        %v537 = vld [vmem:[#allocation5 + $0x180] sm:$0xff]
        %v538 = vld [vmem:[#allocation5 + $0x188] sm:$0xff]
        %v539 = vld [vmem:[#allocation5 + $0x190] sm:$0xff]
        %v540 = vld [vmem:[#allocation5 + $0x198] sm:$0xff]
        %v541 = vld [vmem:[#allocation5 + $0x1a0] sm:$0xff]
        %v542 = vld [vmem:[#allocation5 + $0x1a8] sm:$0xff]
        %v543 = vld [vmem:[#allocation5 + $0x1b0] sm:$0xff]
        %v544 = vld [vmem:[#allocation5 + $0x1b8] sm:$0xff]
        %v545 = vld [vmem:[#allocation5 + $0x1c0] sm:$0xff]
        %v546 = vld [vmem:[#allocation5 + $0x1c8] sm:$0xff]
        %v547 = vld [vmem:[#allocation5 + $0x1d0] sm:$0xff]
        %v548 = vld [vmem:[#allocation5 + $0x1d8] sm:$0xff]
        %v549 = vld [vmem:[#allocation5 + $0x1e0] sm:$0xff]
        %v550 = vld [vmem:[#allocation5 + $0x1e8] sm:$0xff]
        %v551 = vld [vmem:[#allocation5 + $0x1f0] sm:$0xff]
        %v552 = vld [vmem:[#allocation5 + $0x1f8] sm:$0xff]
        %v553 = vld [vmem:[%s4] sm:$0x1]
        %v555 = vlaneseq
        %v556 = vshrl.u32 %v555, 7
        %v557 = vsub.s32 0, %v556
        %v558 = vrot.slane %v553, %v557
        %560 = vmatprep.subr.mxu0 0.0
        %561 = vmatpush1.msra.mxu0 %v489
        %562 = vmatprep.subr.mxu0 0.0
        %563 = vmatpush1.msra.mxu0 %v490
        %564 = vmatprep.subr.mxu0 0.0
        %565 = vmatpush1.msra.mxu0 %v491
        %566 = vmatprep.subr.mxu0 0.0
        %567 = vmatpush1.msra.mxu0 %v492
        %568 = vmatprep.subr.mxu0 0.0
        %569 = vmatpush1.msra.mxu0 %v493
        %570 = vmatprep.subr.mxu0 0.0
        %571 = vmatpush1.msra.mxu0 %v494
        %572 = vmatprep.subr.mxu0 0.0
        %573 = vmatpush1.msra.mxu0 %v495
        %574 = vmatprep.subr.mxu0 0.0
        %575 = vmatpush1.msra.mxu0 %v496
        %576 = vmatprep.subr.mxu0 0.0
        %577 = vmatpush1.msra.mxu0 %v497
        %578 = vmatprep.subr.mxu0 0.0
        %579 = vmatpush1.msra.mxu0 %v498
        %580 = vmatprep.subr.mxu0 0.0
        %581 = vmatpush1.msra.mxu0 %v499
        %582 = vmatprep.subr.mxu0 0.0
        %583 = vmatpush1.msra.mxu0 %v500
        %584 = vmatprep.subr.mxu0 0.0
        %585 = vmatpush1.msra.mxu0 %v501
        %586 = vmatprep.subr.mxu0 0.0
        %587 = vmatpush1.msra.mxu0 %v502
        %588 = vmatprep.subr.mxu0 0.0
        %589 = vmatpush1.msra.mxu0 %v503
        %590 = vmatprep.subr.mxu0 0.0
        %591 = vmatpush1.msra.mxu0 %v504
        %592 = vmatprep.subr.mxu0 0.0
        %593 = vmatpush1.msra.mxu0 %v505
        %594 = vmatprep.subr.mxu0 0.0
        %595 = vmatpush1.msra.mxu0 %v506
        %596 = vmatprep.subr.mxu0 0.0
        %597 = vmatpush1.msra.mxu0 %v507
        %598 = vmatprep.subr.mxu0 0.0
        %599 = vmatpush1.msra.mxu0 %v508
        %600 = vmatprep.subr.mxu0 0.0
        %601 = vmatpush1.msra.mxu0 %v509
        %602 = vmatprep.subr.mxu0 0.0
        %603 = vmatpush1.msra.mxu0 %v510
        %604 = vmatprep.subr.mxu0 0.0
        %605 = vmatpush1.msra.mxu0 %v511
        %606 = vmatprep.subr.mxu0 0.0
        %607 = vmatpush1.msra.mxu0 %v512
        %608 = vmatprep.subr.mxu0 0.0
        %609 = vmatpush1.msra.mxu0 %v513
        %610 = vmatprep.subr.mxu0 0.0
        %611 = vmatpush1.msra.mxu0 %v514
        %612 = vmatprep.subr.mxu0 0.0
        %613 = vmatpush1.msra.mxu0 %v515
        %614 = vmatprep.subr.mxu0 0.0
        %615 = vmatpush1.msra.mxu0 %v516
        %616 = vmatprep.subr.mxu0 0.0
        %617 = vmatpush1.msra.mxu0 %v517
        %618 = vmatprep.subr.mxu0 0.0
        %619 = vmatpush1.msra.mxu0 %v518
        %620 = vmatprep.subr.mxu0 0.0
        %621 = vmatpush1.msra.mxu0 %v519
        %622 = vmatprep.subr.mxu0 0.0
        %623 = vmatpush1.msra.mxu0 %v520
        %624 = vmatprep.mubr.f32.mxu0 %v380
        %625 = vmatmul.mubr.f32.gmra.mrb[0].mxu0 %v378
        %v626 = vpop.f32.mrb[0].mxu0
        %v627 = vadd.f32 %v558, %v626
        %v628 = vpop.f32.mrb[0].mxu0
        %629 = vmatprep.mubr.f32.mxu0 %v386
        %630 = vmatmul.mubr.f32.gmra.mrb[0].mxu0 %v384
        %v631 = vpop.f32.mrb[0].mxu0
        %v632 = vadd.f32 %v558, %v631
        %v633 = vpop.f32.mrb[0].mxu0
        %634 = vmatprep.mubr.f32.mxu0 %v392
        %635 = vmatmul.mubr.f32.gmra.mrb[0].mxu0 %v390
        %v636 = vpop.f32.mrb[0].mxu0
        %v637 = vadd.f32 %v558, %v636
        %v638 = vpop.f32.mrb[0].mxu0
        %639 = vmatprep.mubr.f32.mxu0 %v398
        %640 = vmatmul.mubr.f32.gmra.mrb[0].mxu0 %v396
        %v641 = vpop.f32.mrb[0].mxu0
        %v642 = vadd.f32 %v558, %v641
        %v643 = vpop.f32.mrb[0].mxu0
        %644 = vdwg.mxu0
        %645 = vmatprep.subr.mxu0 0.0
        %646 = vmatpush1.msra.mxu0 %v521
        %647 = vmatprep.subr.mxu0 0.0
        %648 = vmatpush1.msra.mxu0 %v522
        %649 = vmatprep.subr.mxu0 0.0
        %650 = vmatpush1.msra.mxu0 %v523
        %651 = vmatprep.subr.mxu0 0.0
        %652 = vmatpush1.msra.mxu0 %v524
        %653 = vmatprep.subr.mxu0 0.0
        %654 = vmatpush1.msra.mxu0 %v525
        %655 = vmatprep.subr.mxu0 0.0
        %656 = vmatpush1.msra.mxu0 %v526
        %657 = vmatprep.subr.mxu0 0.0
        %658 = vmatpush1.msra.mxu0 %v527
        %659 = vmatprep.subr.mxu0 0.0
        %660 = vmatpush1.msra.mxu0 %v528
        %661 = vmatprep.subr.mxu0 0.0
        %662 = vmatpush1.msra.mxu0 %v529
        %663 = vmatprep.subr.mxu0 0.0
        %664 = vmatpush1.msra.mxu0 %v530
        %665 = vmatprep.subr.mxu0 0.0
        %666 = vmatpush1.msra.mxu0 %v531
        %667 = vmatprep.subr.mxu0 0.0
        %668 = vmatpush1.msra.mxu0 %v532
        %669 = vmatprep.subr.mxu0 0.0
        %670 = vmatpush1.msra.mxu0 %v533
        %671 = vmatprep.subr.mxu0 0.0
        %672 = vmatpush1.msra.mxu0 %v534
        %673 = vmatprep.subr.mxu0 0.0
        %674 = vmatpush1.msra.mxu0 %v535
        %675 = vmatprep.subr.mxu0 0.0
        %676 = vmatpush1.msra.mxu0 %v536
        %677 = vmatprep.subr.mxu0 0.0
        %678 = vmatpush1.msra.mxu0 %v537
        %679 = vmatprep.subr.mxu0 0.0
        %680 = vmatpush1.msra.mxu0 %v538
        %681 = vmatprep.subr.mxu0 0.0
        %682 = vmatpush1.msra.mxu0 %v539
        %683 = vmatprep.subr.mxu0 0.0
        %684 = vmatpush1.msra.mxu0 %v540
        %685 = vmatprep.subr.mxu0 0.0
        %686 = vmatpush1.msra.mxu0 %v541
        %687 = vmatprep.subr.mxu0 0.0
        %688 = vmatpush1.msra.mxu0 %v542
        %689 = vmatprep.subr.mxu0 0.0
        %690 = vmatpush1.msra.mxu0 %v543
        %691 = vmatprep.subr.mxu0 0.0
        %692 = vmatpush1.msra.mxu0 %v544
        %693 = vmatprep.subr.mxu0 0.0
        %694 = vmatpush1.msra.mxu0 %v545
        %695 = vmatprep.subr.mxu0 0.0
        %696 = vmatpush1.msra.mxu0 %v546
        %697 = vmatprep.subr.mxu0 0.0
        %698 = vmatpush1.msra.mxu0 %v547
        %699 = vmatprep.subr.mxu0 0.0
        %700 = vmatpush1.msra.mxu0 %v548
        %701 = vmatprep.subr.mxu0 0.0
        %702 = vmatpush1.msra.mxu0 %v549
        %703 = vmatprep.subr.mxu0 0.0
        %704 = vmatpush1.msra.mxu0 %v550
        %705 = vmatprep.subr.mxu0 0.0
        %706 = vmatpush1.msra.mxu0 %v551
        %707 = vmatprep.subr.mxu0 0.0
        %708 = vmatpush1.msra.mxu0 %v552
        %709 = vmatprep.mubr.f32.mxu0 %v469
        %710 = vmatmul.mubr.f32.gmra.mrb[0].mxu0 %v467
        %v711 = vpop.f32.mrb[0].mxu0
        %v712 = vadd.f32 %v627, %v711
        %v713 = vpop.f32.mrb[0].mxu0
        %714 = vmatprep.mubr.f32.mxu0 %v475
        %715 = vmatmul.mubr.f32.gmra.mrb[0].mxu0 %v473
        %v716 = vpop.f32.mrb[0].mxu0
        %v717 = vadd.f32 %v632, %v716
        %v718 = vpop.f32.mrb[0].mxu0
        %719 = vmatprep.mubr.f32.mxu0 %v481
        %720 = vmatmul.mubr.f32.gmra.mrb[0].mxu0 %v479
        %v721 = vpop.f32.mrb[0].mxu0
        %v722 = vadd.f32 %v637, %v721
        %v723 = vpop.f32.mrb[0].mxu0
        %724 = vmatprep.mubr.f32.mxu0 %v487
        %725 = vmatmul.mubr.f32.gmra.mrb[0].mxu0 %v485
        %v726 = vpop.f32.mrb[0].mxu0
        %v727 = vadd.f32 %v642, %v726
        %v728 = vpop.f32.mrb[0].mxu0
        %729 = vdwg.mxu0
        %v730 = vxor.u32 %v712, 2147483648
        %v731 = vxor.u32 %v717, 2147483648
        %v732 = vxor.u32 %v722, 2147483648
        %v733 = vxor.u32 %v727, 2147483648
        %v734 = vmul.f32 %v730, 1.442695
        %v735 = vpow.pop %v734
        %v736 = vmul.f32 %v731, 1.442695
        %v737 = vpow.pop %v736
        %v738 = vmul.f32 %v732, 1.442695
        %v739 = vpow.pop %v738
        %v740 = vmul.f32 %v733, 1.442695
        %v741 = vpow.pop %v740
        %v742 = vadd.f32 %v735, 1.0
        %v743 = vadd.f32 %v737, 1.0
        %v744 = vadd.f32 %v739, 1.0
        %v745 = vadd.f32 %v741, 1.0
        %v746 = vrcp.pop %v742
        %v747 = vmul.f32 1.0, %v746
        %v748 = vrcp.pop %v743
        %v749 = vmul.f32 1.0, %v748
        %v750 = vrcp.pop %v744
        %v751 = vmul.f32 1.0, %v750
        %v752 = vrcp.pop %v745
        %v753 = vmul.f32 1.0, %v752
        %754 = vst [vmem:[%s248] sm:$0xff] %v747
        %755 = vst [vmem:[%s248 + $0x8] sm:$0xff] %v749
        %756 = vst [vmem:[%s248 + $0x10] sm:$0xff] %v751
        %757 = vst [vmem:[%s248 + $0x18] sm:$0xff] %v753
        %s758 = sand.u32 %s139, 1
        %s759 = scalar_lea.sflag [#allocation4], %s758
        %s760 = sand.u32 %s139, 1
        %s761 = smul.addr %s760, 32
        %s762 = scalar_lea.vmem [#allocation7], %s761
        // Predicated region
        $region49: #{tpu_custom_call.1} parent=39 // pred_check
          %p763 = pneg %p149
        $region50: #{tpu_custom_call.1} parent=39 // pred_check_branch
          %765 = sbr.rel (%p763) target = $region52
        $region51: #{tpu_custom_call.1} parent=39 // pred_region
          %s766 = smul.u32 4, %s21
          %s768 = ssub.s32 512, 512
          %769 = vsyncadd %s759, %s768
          %s770 = smul.addr %s766, 128
          %s771 = scalar_lea.hbm %s5, %s770
          %s772 = sshll.u32 %s762, 4
          %s773 = int_to_ptr.vmem [resolvable:$true] %s772
          %778 = dma.vmem_to_hbm [thread:$0]  %s773, 512, %s771, %s759, 128, 128, 8
        $region52: #{tpu_custom_call.1} parent=39 // pred_fallthru
          _
      $region40: #{tpu_custom_call.1} parent=5 // pred_fallthru
        _
      %p779 = scmp.le.s32.totalorder 2, %s16
      // Predicated region
      $region53: #{tpu_custom_call.1} parent=5 // pred_check
        %p780 = pneg %p779
      $region54: #{tpu_custom_call.1} parent=5 // pred_check_branch
        %782 = sbr.rel (%p780) target = $region56
      $region55: #{tpu_custom_call.1} parent=5 // pred_region
        %s783 = ssub.s32 %s16, 2
        // Predicated region
        $region57: #{tpu_custom_call.1} parent=55 // pred_check
          %p784 = pneg %p155
        $region58: #{tpu_custom_call.1} parent=55 // pred_check_branch
          %786 = sbr.rel (%p784) target = $region60
        $region59: #{tpu_custom_call.1} parent=55 // pred_region
          %s787 = sand.u32 %s140, 1
          %s788 = scalar_lea.sflag [#allocation4], %s787
          %s789 = sand.u32 %s140, 1
          %s790 = smul.addr %s789, 32
          %s791 = scalar_lea.vmem [#allocation7], %s790
          %792 = dma.done %s788, 512
        $region60: #{tpu_custom_call.1} parent=55 // pred_fallthru
          _
      $region56: #{tpu_custom_call.1} parent=5 // pred_fallthru
        _
    $region6: #{tpu_custom_call.1} parent=1 // loop_footer
      %s20 = sadd.s32 1, %s16
    $region7: #{tpu_custom_call.1} parent=1 // loop_footer_branch
      %15 = sbr.rel target = $region3
    $region8: #{tpu_custom_call.1} parent=1 // loop_exit
      _
    %793 = vsyncpa [#allocation3], 1
    %s794 = scalar_lea.sflag [#allocation3], 1
    %795 = vsyncpa %s794, 1
    %796 = vsyncpa [#allocation6], 1
    %797 = vsyncpa [#allocation4], 1
    %s798 = scalar_lea.sflag [#allocation4], 1
    %799 = vsyncpa %s798, 1

</llo_original>
